<compile_context>
chip_gen: v7x
topology: tpu7x:2x2x1
jax: 0.10.0
libtpu: 0.0.40
codegen_flags: <defaults>
</compile_context>

<pallas_src>
import functools

import jax
import jax.numpy as jnp
from jax.experimental import pallas as pl
from jax.experimental.pallas import tpu as pltpu

LANE = 128
MAX_BLOCK_B = 2048   # VMEM guard for very large training batches (v7x: 64 MiB phys).


def _round_up(x, m):
    return (x + m - 1) // m * m


def _num_tensorcores():
    """2 TensorCores per chip on v7x, 1 on v5e/v6e. Default to 1 (always safe)."""
    try:
        kind = jax.devices()[0].device_kind.lower()
    except Exception:
        return 1
    return 2 if ("v7" in kind or "7x" in kind) else 1


def qnetwork_kernel(x_ref, w_ref, b_ref, o_ref, xp_ref):
    """Fused MLP tile: all layers unrolled, weights + activations resident in VMEM."""
    obs_dim = x_ref.shape[1]           # static (4)
    n_layers = w_ref.shape[0]          # static (3)
    # Zero-extend the (TB, obs_dim) input tile to the 128-lane padded width in
    # VMEM (one vreg fill + one masked lane store) so every matmul is a full
    # (TB,128)x(128,128) MXU call — no wrapper-side padding round trip.
    xp_ref[...] = jnp.zeros_like(xp_ref)
    xp_ref[:, :obs_dim] = x_ref[...]
    h = xp_ref[...]                    # (TB, D) f32
    for i in range(n_layers):          # static Python unroll
        # bf16 MXU operands, f32 accumulation; bias add / ReLU in f32 on VPU.
        h = jnp.dot(h.astype(jnp.bfloat16), w_ref[i],
                    preferred_element_type=jnp.float32)
        h = h + b_ref[i]               # (1, D) broadcast over sublanes
        if i < n_layers - 1:
            h = jnp.maximum(h, 0.0)
    o_ref[...] = h.astype(o_ref.dtype)


def pack_params(params, obs_dim, hidden, num_actions):
    """Pack + zero-pad (W1,b1,W2,b2,W3,b3) into two lane-aligned slabs (done once)."""
    dims = [obs_dim] + list(hidden) + [num_actions]
    n_layers = len(dims) - 1
    D = _round_up(max(dims), LANE)
    w = jnp.zeros((n_layers, D, D), jnp.bfloat16)
    b = jnp.zeros((n_layers, 1, D), jnp.float32)
    for i in range(n_layers):
        fi, fo = dims[i], dims[i + 1]
        w = w.at[i, :fi, :fo].set(params[f"w{i+1}"].astype(jnp.bfloat16))
        b = b.at[i, 0, :fo].set(params[f"b{i+1}"].reshape(-1).astype(jnp.float32))
    # Defense-in-depth: padded output columns get a huge negative bias so an
    # argmax over the raw padded row can never pick a padded action.
    b = b.at[n_layers - 1, 0, num_actions:].set(-1e30)
    return w, b


@functools.partial(jax.jit, static_argnames=("num_actions", "num_cores"))
def qnetwork_forward(x, w_packed, b_packed, *, num_actions, num_cores=1):
    """x: (B, obs_dim) f32; returns (B, num_actions) f32 Q-values."""
    B, obs_dim = x.shape
    n_layers, D, _ = w_packed.shape

    # --- Tile / grid selection (perf review) ---------------------------------
    #   v5e / v6e (1 TC): one grid step covering the whole batch (grid=(1,)).
    #   v7x      (2 TC): 2-step "parallel" grid so both cores get a tile,
    #                    unless the batch is too small to split.
    #   Tiny act() batches are rounded to a sublane multiple (8), not to 128.
    nb = num_cores if (num_cores > 1 and B > 8) else 1
    block_b = min(_round_up(pl.cdiv(B, nb), 8), MAX_BLOCK_B)
    nb = pl.cdiv(B, block_b)
    Bp = nb * block_b

    # Only the batch dim is (cheaply) padded; features keep their natural width,
    # so there is no (Bp, 128) x-padding round trip through HBM.
    if Bp != B:
        x = jnp.zeros((Bp, obs_dim), x.dtype).at[:B].set(x)

    flops = 2 * Bp * D * D * n_layers
    bytes_accessed = (Bp * obs_dim * 4 + w_packed.size * 2
                      + b_packed.size * 4 + Bp * D * 4)

    out = pl.pallas_call(
        qnetwork_kernel,
        out_shape=jax.ShapeDtypeStruct((Bp, D), jnp.float32),
        grid=(nb,),
        in_specs=[
            pl.BlockSpec((block_b, obs_dim), lambda i: (i, 0)),   # narrow x tile
            pl.BlockSpec((n_layers, D, D), lambda i: (0, 0, 0)),  # packed W (grid-invariant)
            pl.BlockSpec((n_layers, 1, D), lambda i: (0, 0, 0)),  # packed b (grid-invariant)
        ],
        out_specs=pl.BlockSpec((block_b, D), lambda i: (i, 0)),   # lane-dense output
        scratch_shapes=[pltpu.VMEM((block_b, D), jnp.float32)],   # padded-x staging
        compiler_params=pltpu.CompilerParams(
            dimension_semantics=("parallel",)),
        cost_estimate=pl.CostEstimate(flops=flops, transcendentals=0,
                                      bytes_accessed=bytes_accessed),
    )(x, w_packed, b_packed)

    # Slice padded rows/columns off BEFORE any argmax (stays a fused XLA slice).
    return out[:B, :num_actions]


def init_params(key, obs_dim, hidden, num_actions):
    """Deterministic init mimicking torch.nn.Linear default (uniform +-1/sqrt(fan_in))."""
    dims = [obs_dim] + list(hidden) + [num_actions]
    params = {}
    for i, (fan_in, fan_out) in enumerate(zip(dims[:-1], dims[1:]), start=1):
        key, kw, kb = jax.random.split(key, 3)
        bound = 1.0 / (fan_in ** 0.5)
        params[f"w{i}"] = jax.random.uniform(
            kw, (fan_in, fan_out), jnp.float32, minval=-bound, maxval=bound)
        params[f"b{i}"] = jax.random.uniform(
            kb, (1, fan_out), jnp.float32, minval=-bound, maxval=bound)
    return params


if __name__ == "__main__":
    # CartPole: observation_shape = (4,), num_actions = 2, hidden = [124, 80]
    OBS_DIM = 4
    NUM_ACTIONS = 2
    HIDDEN = [124, 80]

    key = jax.random.PRNGKey(0)
    key, kp = jax.random.split(key)
    params = init_params(kp, OBS_DIM, HIDDEN, NUM_ACTIONS)

    # Pack / pad parameters once, outside the hot path.
    w_packed, b_packed = pack_params(params, OBS_DIM, HIDDEN, NUM_ACTIONS)
    num_cores = _num_tensorcores()

    def ref_bf16(x):
        # Identical math to the kernel (bf16 matmul operands, f32 accumulation).
        h = x
        for i in range(3):
            h = jnp.dot(h.astype(jnp.bfloat16),
                        params[f"w{i+1}"].astype(jnp.bfloat16),
                        preferred_element_type=jnp.float32) + params[f"b{i+1}"]
            if i < 2:
                h = jnp.maximum(h, 0.0)
        return h

    def ref_f32(x):
        # Pure-f32 torch semantics (loose sanity check on the bf16 path).
        h = jnp.maximum(x @ params["w1"] + params["b1"], 0.0)
        h = jnp.maximum(h @ params["w2"] + params["b2"], 0.0)
        return h @ params["w3"] + params["b3"]

    # Replay-batch path (B=256) and tiny act() path (B=3, exercises batch pad).
    for BATCH in (256, 3):
        key, kx = jax.random.split(key)
        x = jax.random.normal(kx, (BATCH, OBS_DIM), dtype=jnp.float32)
        q_values = qnetwork_forward(x, w_packed, b_packed,
                                    num_actions=NUM_ACTIONS, num_cores=num_cores)
        jax.block_until_ready(q_values)
        assert q_values.shape == (BATCH, NUM_ACTIONS)
        err_bf16 = float(jnp.max(jnp.abs(q_values - ref_bf16(x))))
        err_f32 = float(jnp.max(jnp.abs(q_values - ref_f32(x))))
        assert err_bf16 < 1e-3, err_bf16
        assert err_f32 < 5e-2, err_f32

    print("KERNEL_OK")
</pallas_src>

<mosaic_0001>
module attributes {stable_mosaic.version = 11 : i64} {
  func.func @qnetwork_kernel(%arg0: i32, %arg1: memref<256x4xf32, #tpu.memory_space<vmem>>, %arg2: memref<3x128x128xbf16, #tpu.memory_space<vmem>>, %arg3: memref<3x1x128xf32, #tpu.memory_space<vmem>>, %arg4: memref<256x128xf32, #tpu.memory_space<vmem>>, %arg5: memref<256x128xf32, #tpu.memory_space<vmem>>) attributes {dimension_semantics = [#tpu.dimension_semantics<parallel>], iteration_bounds = array<i64: 1>, scalar_prefetch = 0 : i64, scratch_operands = 1 : i64, tpu.core_type = #tpu.core_type<tc>, window_params = [{transform_indices = @transform_0, window_bounds = array<i64: 256, 4>}, {pipeline_mode = #tpu.pipeline_mode<synchronous>, transform_indices = @transform_1, window_bounds = array<i64: 3, 128, 128>}, {pipeline_mode = #tpu.pipeline_mode<synchronous>, transform_indices = @transform_2, window_bounds = array<i64: 3, 1, 128>}, {transform_indices = @transform_3, window_bounds = array<i64: 256, 128>}]} {
    %cst = arith.constant 0.000000e+00 : f32
    %0 = vector.broadcast %cst : f32 to vector<256x128xf32>
    %c0 = arith.constant 0 : index
    %c0_0 = arith.constant 0 : index
    %1 = vector.load %arg5[%c0, %c0_0] : memref<256x128xf32, #tpu.memory_space<vmem>>, vector<256x128xf32>
    tpu.vector_store %arg5[%c0, %c0_0], %0 {strides = array<i32>} : memref<256x128xf32, #tpu.memory_space<vmem>>, vector<256x128xf32>,
    %c0_1 = arith.constant 0 : index
    %c0_2 = arith.constant 0 : index
    %2 = vector.load %arg1[%c0_1, %c0_2] : memref<256x4xf32, #tpu.memory_space<vmem>>, vector<256x4xf32>
    %c0_3 = arith.constant 0 : index
    %c0_4 = arith.constant 0 : index
    %3 = vector.load %arg5[%c0_3, %c0_4] : memref<256x128xf32, #tpu.memory_space<vmem>>, vector<256x4xf32>
    tpu.vector_store %arg5[%c0_3, %c0_4], %2 {strides = array<i32>} : memref<256x128xf32, #tpu.memory_space<vmem>>, vector<256x4xf32>,
    %c0_5 = arith.constant 0 : index
    %c0_6 = arith.constant 0 : index
    %4 = vector.load %arg5[%c0_5, %c0_6] : memref<256x128xf32, #tpu.memory_space<vmem>>, vector<256x128xf32>
    %5 = arith.truncf %4 : vector<256x128xf32> to vector<256x128xbf16>
    %c0_7 = arith.constant 0 : index
    %c0_8 = arith.constant 0 : index
    %c0_9 = arith.constant 0 : index
    %6 = vector.load %arg2[%c0_7, %c0_8, %c0_9] : memref<3x128x128xbf16, #tpu.memory_space<vmem>>, vector<1x128x128xbf16>
    %7 = vector.shape_cast %6 : vector<1x128x128xbf16> to vector<128x128xbf16>
    %cst_10 = arith.constant dense<0.000000e+00> : vector<256x128xf32>
    %8 = tpu.matmul %5, %7, %cst_10 {dimension_numbers = #tpu.dot_dimension_numbers<[1], [0], [0], [1], [0, 0, 1, 1], [], []>} : vector<256x128xbf16>, vector<128x128xbf16>, vector<256x128xf32> -> vector<256x128xf32>
    %c0_11 = arith.constant 0 : index
    %c0_12 = arith.constant 0 : index
    %c0_13 = arith.constant 0 : index
    %9 = vector.load %arg3[%c0_11, %c0_12, %c0_13] : memref<3x1x128xf32, #tpu.memory_space<vmem>>, vector<1x1x128xf32>
    %10 = vector.shape_cast %9 : vector<1x1x128xf32> to vector<1x128xf32>
    %11 = vector.broadcast %10 : vector<1x128xf32> to vector<256x128xf32>
    %12 = arith.addf %8, %11 : vector<256x128xf32>
    %cst_14 = arith.constant 0.000000e+00 : f32
    %13 = vector.broadcast %cst_14 : f32 to vector<256x128xf32>
    %14 = arith.maximumf %12, %13 : vector<256x128xf32>
    %15 = arith.truncf %14 : vector<256x128xf32> to vector<256x128xbf16>
    %c1 = arith.constant 1 : index
    %c0_15 = arith.constant 0 : index
    %c0_16 = arith.constant 0 : index
    %16 = vector.load %arg2[%c1, %c0_15, %c0_16] : memref<3x128x128xbf16, #tpu.memory_space<vmem>>, vector<1x128x128xbf16>
    %17 = vector.shape_cast %16 : vector<1x128x128xbf16> to vector<128x128xbf16>
    %cst_17 = arith.constant dense<0.000000e+00> : vector<256x128xf32>
    %18 = tpu.matmul %15, %17, %cst_17 {dimension_numbers = #tpu.dot_dimension_numbers<[1], [0], [0], [1], [0, 0, 1, 1], [], []>} : vector<256x128xbf16>, vector<128x128xbf16>, vector<256x128xf32> -> vector<256x128xf32>
    %c1_18 = arith.constant 1 : index
    %c0_19 = arith.constant 0 : index
    %c0_20 = arith.constant 0 : index
    %19 = vector.load %arg3[%c1_18, %c0_19, %c0_20] : memref<3x1x128xf32, #tpu.memory_space<vmem>>, vector<1x1x128xf32>
    %20 = vector.shape_cast %19 : vector<1x1x128xf32> to vector<1x128xf32>
    %21 = vector.broadcast %20 : vector<1x128xf32> to vector<256x128xf32>
    %22 = arith.addf %18, %21 : vector<256x128xf32>
    %cst_21 = arith.constant 0.000000e+00 : f32
    %23 = vector.broadcast %cst_21 : f32 to vector<256x128xf32>
    %24 = arith.maximumf %22, %23 : vector<256x128xf32>
    %25 = arith.truncf %24 : vector<256x128xf32> to vector<256x128xbf16>
    %c2 = arith.constant 2 : index
    %c0_22 = arith.constant 0 : index
    %c0_23 = arith.constant 0 : index
    %26 = vector.load %arg2[%c2, %c0_22, %c0_23] : memref<3x128x128xbf16, #tpu.memory_space<vmem>>, vector<1x128x128xbf16>
    %27 = vector.shape_cast %26 : vector<1x128x128xbf16> to vector<128x128xbf16>
    %cst_24 = arith.constant dense<0.000000e+00> : vector<256x128xf32>
    %28 = tpu.matmul %25, %27, %cst_24 {dimension_numbers = #tpu.dot_dimension_numbers<[1], [0], [0], [1], [0, 0, 1, 1], [], []>} : vector<256x128xbf16>, vector<128x128xbf16>, vector<256x128xf32> -> vector<256x128xf32>
    %c2_25 = arith.constant 2 : index
    %c0_26 = arith.constant 0 : index
    %c0_27 = arith.constant 0 : index
    %29 = vector.load %arg3[%c2_25, %c0_26, %c0_27] : memref<3x1x128xf32, #tpu.memory_space<vmem>>, vector<1x1x128xf32>
    %30 = vector.shape_cast %29 : vector<1x1x128xf32> to vector<1x128xf32>
    %31 = vector.broadcast %30 : vector<1x128xf32> to vector<256x128xf32>
    %32 = arith.addf %28, %31 : vector<256x128xf32>
    %c0_28 = arith.constant 0 : index
    %c0_29 = arith.constant 0 : index
    %33 = vector.load %arg4[%c0_28, %c0_29] : memref<256x128xf32, #tpu.memory_space<vmem>>, vector<256x128xf32>
    tpu.vector_store %arg4[%c0_28, %c0_29], %32 {strides = array<i32>} : memref<256x128xf32, #tpu.memory_space<vmem>>, vector<256x128xf32>,
    return
  }
  func.func @transform_0(%arg0: i32) -> (i32, i32) {
    %c0_i32 = arith.constant 0 : i32
    %c0_i32_0 = arith.constant 0 : i32
    return %arg0, %c0_i32 : i32, i32
  }
  func.func @transform_1(%arg0: i32) -> (i32, i32, i32) {
    %c0_i32 = arith.constant 0 : i32
    %c0_i32_0 = arith.constant 0 : i32
    %c0_i32_1 = arith.constant 0 : i32
    %c0_i32_2 = arith.constant 0 : i32
    return %c0_i32, %c0_i32_0, %c0_i32_1 : i32, i32, i32
  }
  func.func @transform_2(%arg0: i32) -> (i32, i32, i32) {
    %c0_i32 = arith.constant 0 : i32
    %c0_i32_0 = arith.constant 0 : i32
    %c0_i32_1 = arith.constant 0 : i32
    %c0_i32_2 = arith.constant 0 : i32
    return %c0_i32, %c0_i32_0, %c0_i32_1 : i32, i32, i32
  }
  func.func @transform_3(%arg0: i32) -> (i32, i32) {
    %c0_i32 = arith.constant 0 : i32
    %c0_i32_0 = arith.constant 0 : i32
    return %arg0, %c0_i32 : i32, i32
  }
}

</mosaic_0001>

<llo_original>
// kernel: qnetwork_forward.1
$region0: #{qnetwork_forward.1}
  #allocation0 [shape = 'u32[]', space=smem, size = 0x4, offset = 0x4, fixed_abs, tag = 'smem constant byte address 0x4 - core index']
  #allocation1 [shape = 'u32[144,128]{1,0:T(1,128)}', space=vmem, size = 0x12000, scoped, tag = 'internal scratch']
  #allocation2 [shape = 'f32[256,128]{1,0:T(8,128)}', space=vmem, size = 0x20000, scoped, tag = 'scratch operand']
  %s0 = inlined_call_operand.vmem [shape: f32[256,4], index: 0, kind: input, shape index: {}]
  %s1 = inlined_call_operand.vmem [shape: bf16[3,128,128], index: 1, kind: input, shape index: {}]
  %s2 = inlined_call_operand.vmem [shape: f32[3,1,128], index: 2, kind: input, shape index: {}]
  %s3 = inlined_call_operand.vmem [shape: f32[256,128], index: 3, kind: output, shape index: {}]
  %s4 = sld [smem:[#allocation0]]
  $region22: #{qnetwork_forward.1} parent=0
    _
  %s6 = ssub.s32 1, %s4
  %s7 = scalar_select 0, %s6, %s4
  // Predicated region
  $region2: #{qnetwork_forward.1} parent=0 // pred_check
    _
  $region3: #{qnetwork_forward.1} parent=0 // pred_check_branch
    %9 = sbr.rel (0) target = $region5
  $region4: #{qnetwork_forward.1} parent=0 // pred_region
    _
  $region5: #{qnetwork_forward.1} parent=0 // pred_fallthru
    _
  // Predicated region
  $region6: #{qnetwork_forward.1} parent=0 // pred_check
    _
  $region7: #{qnetwork_forward.1} parent=0 // pred_check_branch
    %11 = sbr.rel (0) target = $region9
  $region8: #{qnetwork_forward.1} parent=0 // pred_region
    _
  $region9: #{qnetwork_forward.1} parent=0 // pred_fallthru
    _
  // Predicated region
  $region10: #{qnetwork_forward.1} parent=0 // pred_check
    _
  $region11: #{qnetwork_forward.1} parent=0 // pred_check_branch
    %13 = sbr.rel (0) target = $region13
  $region12: #{qnetwork_forward.1} parent=0 // pred_region
    _
  $region13: #{qnetwork_forward.1} parent=0 // pred_fallthru
    _
  %15 = vst [vmem:[#allocation2] sm:$0xff] 0.0
  %16 = vst [vmem:[#allocation2 + $0x8] sm:$0xff] 0.0
  %17 = vst [vmem:[#allocation2 + $0x10] sm:$0xff] 0.0
  %18 = vst [vmem:[#allocation2 + $0x18] sm:$0xff] 0.0
  %19 = vst [vmem:[#allocation2 + $0x20] sm:$0xff] 0.0
  %20 = vst [vmem:[#allocation2 + $0x28] sm:$0xff] 0.0
  %21 = vst [vmem:[#allocation2 + $0x30] sm:$0xff] 0.0
  %22 = vst [vmem:[#allocation2 + $0x38] sm:$0xff] 0.0
  %23 = vst [vmem:[#allocation2 + $0x40] sm:$0xff] 0.0
  %24 = vst [vmem:[#allocation2 + $0x48] sm:$0xff] 0.0
  %25 = vst [vmem:[#allocation2 + $0x50] sm:$0xff] 0.0
  %26 = vst [vmem:[#allocation2 + $0x58] sm:$0xff] 0.0
  %27 = vst [vmem:[#allocation2 + $0x60] sm:$0xff] 0.0
  %28 = vst [vmem:[#allocation2 + $0x68] sm:$0xff] 0.0
  %29 = vst [vmem:[#allocation2 + $0x70] sm:$0xff] 0.0
  %30 = vst [vmem:[#allocation2 + $0x78] sm:$0xff] 0.0
  %31 = vst [vmem:[#allocation2 + $0x80] sm:$0xff] 0.0
  %32 = vst [vmem:[#allocation2 + $0x88] sm:$0xff] 0.0
  %33 = vst [vmem:[#allocation2 + $0x90] sm:$0xff] 0.0
  %34 = vst [vmem:[#allocation2 + $0x98] sm:$0xff] 0.0
  %35 = vst [vmem:[#allocation2 + $0xa0] sm:$0xff] 0.0
  %36 = vst [vmem:[#allocation2 + $0xa8] sm:$0xff] 0.0
  %37 = vst [vmem:[#allocation2 + $0xb0] sm:$0xff] 0.0
  %38 = vst [vmem:[#allocation2 + $0xb8] sm:$0xff] 0.0
  %39 = vst [vmem:[#allocation2 + $0xc0] sm:$0xff] 0.0
  %40 = vst [vmem:[#allocation2 + $0xc8] sm:$0xff] 0.0
  %41 = vst [vmem:[#allocation2 + $0xd0] sm:$0xff] 0.0
  %42 = vst [vmem:[#allocation2 + $0xd8] sm:$0xff] 0.0
  %43 = vst [vmem:[#allocation2 + $0xe0] sm:$0xff] 0.0
  %44 = vst [vmem:[#allocation2 + $0xe8] sm:$0xff] 0.0
  %45 = vst [vmem:[#allocation2 + $0xf0] sm:$0xff] 0.0
  %46 = vst [vmem:[#allocation2 + $0xf8] sm:$0xff] 0.0
  %v47 = vld [vmem:[%s0] sm:$0xff]
  %v48 = vld [vmem:[%s0 + $0x8] sm:$0xff]
  %v49 = vld [vmem:[%s0 + $0x10] sm:$0xff]
  %v50 = vld [vmem:[%s0 + $0x18] sm:$0xff]
  %v51 = vld [vmem:[%s0 + $0x20] sm:$0xff]
  %v52 = vld [vmem:[%s0 + $0x28] sm:$0xff]
  %v53 = vld [vmem:[%s0 + $0x30] sm:$0xff]
  %v54 = vld [vmem:[%s0 + $0x38] sm:$0xff]
  %v55 = vld [vmem:[%s0 + $0x40] sm:$0xff]
  %v56 = vld [vmem:[%s0 + $0x48] sm:$0xff]
  %v57 = vld [vmem:[%s0 + $0x50] sm:$0xff]
  %v58 = vld [vmem:[%s0 + $0x58] sm:$0xff]
  %v59 = vld [vmem:[%s0 + $0x60] sm:$0xff]
  %v60 = vld [vmem:[%s0 + $0x68] sm:$0xff]
  %v61 = vld [vmem:[%s0 + $0x70] sm:$0xff]
  %v62 = vld [vmem:[%s0 + $0x78] sm:$0xff]
  %v63 = vld [vmem:[%s0 + $0x80] sm:$0xff]
  %v64 = vld [vmem:[%s0 + $0x88] sm:$0xff]
  %v65 = vld [vmem:[%s0 + $0x90] sm:$0xff]
  %v66 = vld [vmem:[%s0 + $0x98] sm:$0xff]
  %v67 = vld [vmem:[%s0 + $0xa0] sm:$0xff]
  %v68 = vld [vmem:[%s0 + $0xa8] sm:$0xff]
  %v69 = vld [vmem:[%s0 + $0xb0] sm:$0xff]
  %v70 = vld [vmem:[%s0 + $0xb8] sm:$0xff]
  %v71 = vld [vmem:[%s0 + $0xc0] sm:$0xff]
  %v72 = vld [vmem:[%s0 + $0xc8] sm:$0xff]
  %v73 = vld [vmem:[%s0 + $0xd0] sm:$0xff]
  %v74 = vld [vmem:[%s0 + $0xd8] sm:$0xff]
  %v75 = vld [vmem:[%s0 + $0xe0] sm:$0xff]
  %v76 = vld [vmem:[%s0 + $0xe8] sm:$0xff]
  %v77 = vld [vmem:[%s0 + $0xf0] sm:$0xff]
  %v78 = vld [vmem:[%s0 + $0xf8] sm:$0xff]
  %vm79 = vcmask 31744
  %80 = vst.msk [vmem:[#allocation2] sm:$0xff] %vm79, %v47
  %81 = vst.msk [vmem:[#allocation2 + $0x8] sm:$0xff] %vm79, %v48
  %82 = vst.msk [vmem:[#allocation2 + $0x10] sm:$0xff] %vm79, %v49
  %83 = vst.msk [vmem:[#allocation2 + $0x18] sm:$0xff] %vm79, %v50
  %84 = vst.msk [vmem:[#allocation2 + $0x20] sm:$0xff] %vm79, %v51
  %85 = vst.msk [vmem:[#allocation2 + $0x28] sm:$0xff] %vm79, %v52
  %86 = vst.msk [vmem:[#allocation2 + $0x30] sm:$0xff] %vm79, %v53
  %87 = vst.msk [vmem:[#allocation2 + $0x38] sm:$0xff] %vm79, %v54
  %88 = vst.msk [vmem:[#allocation2 + $0x40] sm:$0xff] %vm79, %v55
  %89 = vst.msk [vmem:[#allocation2 + $0x48] sm:$0xff] %vm79, %v56
  %90 = vst.msk [vmem:[#allocation2 + $0x50] sm:$0xff] %vm79, %v57
  %91 = vst.msk [vmem:[#allocation2 + $0x58] sm:$0xff] %vm79, %v58
  %92 = vst.msk [vmem:[#allocation2 + $0x60] sm:$0xff] %vm79, %v59
  %93 = vst.msk [vmem:[#allocation2 + $0x68] sm:$0xff] %vm79, %v60
  %94 = vst.msk [vmem:[#allocation2 + $0x70] sm:$0xff] %vm79, %v61
  %95 = vst.msk [vmem:[#allocation2 + $0x78] sm:$0xff] %vm79, %v62
  %96 = vst.msk [vmem:[#allocation2 + $0x80] sm:$0xff] %vm79, %v63
  %97 = vst.msk [vmem:[#allocation2 + $0x88] sm:$0xff] %vm79, %v64
  %98 = vst.msk [vmem:[#allocation2 + $0x90] sm:$0xff] %vm79, %v65
  %99 = vst.msk [vmem:[#allocation2 + $0x98] sm:$0xff] %vm79, %v66
  %100 = vst.msk [vmem:[#allocation2 + $0xa0] sm:$0xff] %vm79, %v67
  %101 = vst.msk [vmem:[#allocation2 + $0xa8] sm:$0xff] %vm79, %v68
  %102 = vst.msk [vmem:[#allocation2 + $0xb0] sm:$0xff] %vm79, %v69
  %103 = vst.msk [vmem:[#allocation2 + $0xb8] sm:$0xff] %vm79, %v70
  %104 = vst.msk [vmem:[#allocation2 + $0xc0] sm:$0xff] %vm79, %v71
  %105 = vst.msk [vmem:[#allocation2 + $0xc8] sm:$0xff] %vm79, %v72
  %106 = vst.msk [vmem:[#allocation2 + $0xd0] sm:$0xff] %vm79, %v73
  %107 = vst.msk [vmem:[#allocation2 + $0xd8] sm:$0xff] %vm79, %v74
  %108 = vst.msk [vmem:[#allocation2 + $0xe0] sm:$0xff] %vm79, %v75
  %109 = vst.msk [vmem:[#allocation2 + $0xe8] sm:$0xff] %vm79, %v76
  %110 = vst.msk [vmem:[#allocation2 + $0xf0] sm:$0xff] %vm79, %v77
  %111 = vst.msk [vmem:[#allocation2 + $0xf8] sm:$0xff] %vm79, %v78
  %v112 = vld [vmem:[#allocation2] sm:$0xff]
  %v113 = vld [vmem:[#allocation2 + $0x8] sm:$0xff]
  %v114 = vld [vmem:[#allocation2 + $0x10] sm:$0xff]
  %v115 = vld [vmem:[#allocation2 + $0x18] sm:$0xff]
  %v116 = vld [vmem:[#allocation2 + $0x20] sm:$0xff]
  %v117 = vld [vmem:[#allocation2 + $0x28] sm:$0xff]
  %v118 = vld [vmem:[#allocation2 + $0x30] sm:$0xff]
  %v119 = vld [vmem:[#allocation2 + $0x38] sm:$0xff]
  %v120 = vld [vmem:[#allocation2 + $0x40] sm:$0xff]
  %v121 = vld [vmem:[#allocation2 + $0x48] sm:$0xff]
  %v122 = vld [vmem:[#allocation2 + $0x50] sm:$0xff]
  %v123 = vld [vmem:[#allocation2 + $0x58] sm:$0xff]
  %v124 = vld [vmem:[#allocation2 + $0x60] sm:$0xff]
  %v125 = vld [vmem:[#allocation2 + $0x68] sm:$0xff]
  %v126 = vld [vmem:[#allocation2 + $0x70] sm:$0xff]
  %v127 = vld [vmem:[#allocation2 + $0x78] sm:$0xff]
  %v128 = vld [vmem:[#allocation2 + $0x80] sm:$0xff]
  %v129 = vld [vmem:[#allocation2 + $0x88] sm:$0xff]
  %v130 = vld [vmem:[#allocation2 + $0x90] sm:$0xff]
  %v131 = vld [vmem:[#allocation2 + $0x98] sm:$0xff]
  %v132 = vld [vmem:[#allocation2 + $0xa0] sm:$0xff]
  %v133 = vld [vmem:[#allocation2 + $0xa8] sm:$0xff]
  %v134 = vld [vmem:[#allocation2 + $0xb0] sm:$0xff]
  %v135 = vld [vmem:[#allocation2 + $0xb8] sm:$0xff]
  %v136 = vld [vmem:[#allocation2 + $0xc0] sm:$0xff]
  %v137 = vld [vmem:[#allocation2 + $0xc8] sm:$0xff]
  %v138 = vld [vmem:[#allocation2 + $0xd0] sm:$0xff]
  %v139 = vld [vmem:[#allocation2 + $0xd8] sm:$0xff]
  %v140 = vld [vmem:[#allocation2 + $0xe0] sm:$0xff]
  %v141 = vld [vmem:[#allocation2 + $0xe8] sm:$0xff]
  %v142 = vld [vmem:[#allocation2 + $0xf0] sm:$0xff]
  %v143 = vld [vmem:[#allocation2 + $0xf8] sm:$0xff]
  %v144 = vpack.c.bf16 %v113, %v112
  %v145 = vpack.c.bf16 %v115, %v114
  %v146 = vpack.c.bf16 %v117, %v116
  %v147 = vpack.c.bf16 %v119, %v118
  %v148 = vpack.c.bf16 %v121, %v120
  %v149 = vpack.c.bf16 %v123, %v122
  %v150 = vpack.c.bf16 %v125, %v124
  %v151 = vpack.c.bf16 %v127, %v126
  %v152 = vpack.c.bf16 %v129, %v128
  %v153 = vpack.c.bf16 %v131, %v130
  %v154 = vpack.c.bf16 %v133, %v132
  %v155 = vpack.c.bf16 %v135, %v134
  %v156 = vpack.c.bf16 %v137, %v136
  %v157 = vpack.c.bf16 %v139, %v138
  %v158 = vpack.c.bf16 %v141, %v140
  %v159 = vpack.c.bf16 %v143, %v142
  %v160 = vld [vmem:[%s1] sm:$0xf]
  %v161 = vld [vmem:[%s1 + $0x4] sm:$0xf]
  %v162 = vld [vmem:[%s1 + $0x8] sm:$0xf]
  %v163 = vld [vmem:[%s1 + $0xc] sm:$0xf]
  %v164 = vld [vmem:[%s1 + $0x10] sm:$0xf]
  %v165 = vld [vmem:[%s1 + $0x14] sm:$0xf]
  %v166 = vld [vmem:[%s1 + $0x18] sm:$0xf]
  %v167 = vld [vmem:[%s1 + $0x1c] sm:$0xf]
  %v168 = vld [vmem:[%s1 + $0x20] sm:$0xf]
  %v169 = vld [vmem:[%s1 + $0x24] sm:$0xf]
  %v170 = vld [vmem:[%s1 + $0x28] sm:$0xf]
  %v171 = vld [vmem:[%s1 + $0x2c] sm:$0xf]
  %v172 = vld [vmem:[%s1 + $0x30] sm:$0xf]
  %v173 = vld [vmem:[%s1 + $0x34] sm:$0xf]
  %v174 = vld [vmem:[%s1 + $0x38] sm:$0xf]
  %v175 = vld [vmem:[%s1 + $0x3c] sm:$0xf]
  %v176 = vld [vmem:[%s2] sm:$0x1]
  %v178 = vlaneseq
  %v179 = vshrl.u32 %v178, 7
  %v180 = vsub.s32 0, %v179
  %v181 = vrot.slane %v176, %v180
  %v199 = vunpack.c.l.b16 %v160
  %v200 = vunpack.c.l.b16 %v161
  %v201 = vunpack.c.l.b16 %v162
  %v202 = vunpack.c.l.b16 %v163
  %v203 = vunpack.c.l.b16 %v164
  %v204 = vunpack.c.l.b16 %v165
  %v205 = vunpack.c.l.b16 %v166
  %v206 = vunpack.c.l.b16 %v167
  %v207 = vunpack.c.l.b16 %v168
  %v208 = vunpack.c.l.b16 %v169
  %v209 = vunpack.c.l.b16 %v170
  %v210 = vunpack.c.l.b16 %v171
  %v211 = vunpack.c.l.b16 %v172
  %v212 = vunpack.c.l.b16 %v173
  %v213 = vunpack.c.l.b16 %v174
  %v214 = vunpack.c.l.b16 %v175
  %v215 = vpack.c.b16 %v200, %v199
  %v216 = vpack.c.b16 %v202, %v201
  %v217 = vpack.c.b16 %v204, %v203
  %v218 = vpack.c.b16 %v206, %v205
  %v219 = vpack.c.b16 %v208, %v207
  %v220 = vpack.c.b16 %v210, %v209
  %v221 = vpack.c.b16 %v212, %v211
  %v222 = vpack.c.b16 %v214, %v213
  %231 = vmatprep.subr.bf16.mxu0 0
  %232 = vmatpush1.bf16.msra.mxu0 %v215
  %233 = vmatprep.subr.bf16.mxu0 0
  %234 = vmatpush1.bf16.msra.mxu0 %v216
  %235 = vmatprep.subr.bf16.mxu0 0
  %236 = vmatpush1.bf16.msra.mxu0 %v217
  %237 = vmatprep.subr.bf16.mxu0 0
  %238 = vmatpush1.bf16.msra.mxu0 %v218
  %239 = vmatprep.subr.bf16.mxu0 0
  %240 = vmatpush1.bf16.msra.mxu0 %v219
  %241 = vmatprep.subr.bf16.mxu0 0
  %242 = vmatpush1.bf16.msra.mxu0 %v220
  %243 = vmatprep.subr.bf16.mxu0 0
  %244 = vmatpush1.bf16.msra.mxu0 %v221
  %245 = vmatprep.subr.bf16.mxu0 0
  %246 = vmatpush1.bf16.msra.mxu0 %v222
  %247 = vmatprep.subr.bf16.mxu0 0
  %248 = vmatpush1.bf16.msra.mxu0 0
  %249 = vmatprep.subr.bf16.mxu0 0
  %250 = vmatpush1.bf16.msra.mxu0 0
  %251 = vmatprep.subr.bf16.mxu0 0
  %252 = vmatpush1.bf16.msra.mxu0 0
  %253 = vmatprep.subr.bf16.mxu0 0
  %254 = vmatpush1.bf16.msra.mxu0 0
  %255 = vmatprep.subr.bf16.mxu0 0
  %256 = vmatpush1.bf16.msra.mxu0 0
  %257 = vmatprep.subr.bf16.mxu0 0
  %258 = vmatpush1.bf16.msra.mxu0 0
  %259 = vmatprep.subr.bf16.mxu0 0
  %260 = vmatpush1.bf16.msra.mxu0 0
  %261 = vmatprep.subr.bf16.mxu0 0
  %262 = vmatpush1.bf16.msra.mxu0 0
  %263 = vmatprep.mubr.bf16.mxu0 0
  %264 = vmatmul.mubr.bf16.gmra.mrb[0].mxu0 %v144
  %v265 = vpop.f32.mrb[0].mxu0
  %v266 = vadd.f32 %v181, %v265
  %v267 = vpop.f32.mrb[0].mxu0
  %v268 = vpop.f32.mrb[0].mxu0
  %v269 = vadd.f32 %v181, %v268
  %v270 = vpop.f32.mrb[0].mxu0
  %271 = vmatprep.mubr.bf16.mxu0 0
  %272 = vmatmul.mubr.bf16.gmra.mrb[0].mxu0 %v145
  %v273 = vpop.f32.mrb[0].mxu0
  %v274 = vadd.f32 %v181, %v273
  %v275 = vpop.f32.mrb[0].mxu0
  %v276 = vpop.f32.mrb[0].mxu0
  %v277 = vadd.f32 %v181, %v276
  %v278 = vpop.f32.mrb[0].mxu0
  %279 = vmatprep.mubr.bf16.mxu0 0
  %280 = vmatmul.mubr.bf16.gmra.mrb[0].mxu0 %v146
  %v281 = vpop.f32.mrb[0].mxu0
  %v282 = vadd.f32 %v181, %v281
  %v283 = vpop.f32.mrb[0].mxu0
  %v284 = vpop.f32.mrb[0].mxu0
  %v285 = vadd.f32 %v181, %v284
  %v286 = vpop.f32.mrb[0].mxu0
  %287 = vmatprep.mubr.bf16.mxu0 0
  %288 = vmatmul.mubr.bf16.gmra.mrb[0].mxu0 %v147
  %v289 = vpop.f32.mrb[0].mxu0
  %v290 = vadd.f32 %v181, %v289
  %v291 = vpop.f32.mrb[0].mxu0
  %v292 = vpop.f32.mrb[0].mxu0
  %v293 = vadd.f32 %v181, %v292
  %v294 = vpop.f32.mrb[0].mxu0
  %295 = vmatprep.mubr.bf16.mxu0 0
  %296 = vmatmul.mubr.bf16.gmra.mrb[0].mxu0 %v148
  %v297 = vpop.f32.mrb[0].mxu0
  %v298 = vadd.f32 %v181, %v297
  %v299 = vpop.f32.mrb[0].mxu0
  %v300 = vpop.f32.mrb[0].mxu0
  %v301 = vadd.f32 %v181, %v300
  %v302 = vpop.f32.mrb[0].mxu0
  %303 = vmatprep.mubr.bf16.mxu0 0
  %304 = vmatmul.mubr.bf16.gmra.mrb[0].mxu0 %v149
  %v305 = vpop.f32.mrb[0].mxu0
  %v306 = vadd.f32 %v181, %v305
  %v307 = vpop.f32.mrb[0].mxu0
  %v308 = vpop.f32.mrb[0].mxu0
  %v309 = vadd.f32 %v181, %v308
  %v310 = vpop.f32.mrb[0].mxu0
  %311 = vmatprep.mubr.bf16.mxu0 0
  %312 = vmatmul.mubr.bf16.gmra.mrb[0].mxu0 %v150
  %v313 = vpop.f32.mrb[0].mxu0
  %v314 = vadd.f32 %v181, %v313
  %v315 = vpop.f32.mrb[0].mxu0
  %v316 = vpop.f32.mrb[0].mxu0
  %v317 = vadd.f32 %v181, %v316
  %v318 = vpop.f32.mrb[0].mxu0
  %319 = vmatprep.mubr.bf16.mxu0 0
  %320 = vmatmul.mubr.bf16.gmra.mrb[0].mxu0 %v151
  %v321 = vpop.f32.mrb[0].mxu0
  %v322 = vadd.f32 %v181, %v321
  %v323 = vpop.f32.mrb[0].mxu0
  %v324 = vpop.f32.mrb[0].mxu0
  %v325 = vadd.f32 %v181, %v324
  %v326 = vpop.f32.mrb[0].mxu0
  %327 = vmatprep.mubr.bf16.mxu0 0
  %328 = vmatmul.mubr.bf16.gmra.mrb[0].mxu0 %v152
  %v329 = vpop.f32.mrb[0].mxu0
  %v330 = vadd.f32 %v181, %v329
  %v331 = vpop.f32.mrb[0].mxu0
  %v332 = vpop.f32.mrb[0].mxu0
  %v333 = vadd.f32 %v181, %v332
  %v334 = vpop.f32.mrb[0].mxu0
  %335 = vmatprep.mubr.bf16.mxu0 0
  %336 = vmatmul.mubr.bf16.gmra.mrb[0].mxu0 %v153
  %v337 = vpop.f32.mrb[0].mxu0
  %v338 = vadd.f32 %v181, %v337
  %v339 = vpop.f32.mrb[0].mxu0
  %v340 = vpop.f32.mrb[0].mxu0
  %v341 = vadd.f32 %v181, %v340
  %v342 = vpop.f32.mrb[0].mxu0
  %343 = vmatprep.mubr.bf16.mxu0 0
  %344 = vmatmul.mubr.bf16.gmra.mrb[0].mxu0 %v154
  %v345 = vpop.f32.mrb[0].mxu0
  %v346 = vadd.f32 %v181, %v345
  %v347 = vpop.f32.mrb[0].mxu0
  %v348 = vpop.f32.mrb[0].mxu0
  %v349 = vadd.f32 %v181, %v348
  %v350 = vpop.f32.mrb[0].mxu0
  %351 = vmatprep.mubr.bf16.mxu0 0
  %352 = vmatmul.mubr.bf16.gmra.mrb[0].mxu0 %v155
  %v353 = vpop.f32.mrb[0].mxu0
  %v354 = vadd.f32 %v181, %v353
  %v355 = vpop.f32.mrb[0].mxu0
  %v356 = vpop.f32.mrb[0].mxu0
  %v357 = vadd.f32 %v181, %v356
  %v358 = vpop.f32.mrb[0].mxu0
  %359 = vmatprep.mubr.bf16.mxu0 0
  %360 = vmatmul.mubr.bf16.gmra.mrb[0].mxu0 %v156
  %v361 = vpop.f32.mrb[0].mxu0
  %v362 = vadd.f32 %v181, %v361
  %v363 = vpop.f32.mrb[0].mxu0
  %v364 = vpop.f32.mrb[0].mxu0
  %v365 = vadd.f32 %v181, %v364
  %v366 = vpop.f32.mrb[0].mxu0
  %367 = vmatprep.mubr.bf16.mxu0 0
  %368 = vmatmul.mubr.bf16.gmra.mrb[0].mxu0 %v157
  %v369 = vpop.f32.mrb[0].mxu0
  %v370 = vadd.f32 %v181, %v369
  %v371 = vpop.f32.mrb[0].mxu0
  %v372 = vpop.f32.mrb[0].mxu0
  %v373 = vadd.f32 %v181, %v372
  %v374 = vpop.f32.mrb[0].mxu0
  %375 = vmatprep.mubr.bf16.mxu0 0
  %376 = vmatmul.mubr.bf16.gmra.mrb[0].mxu0 %v158
  %v377 = vpop.f32.mrb[0].mxu0
  %v378 = vadd.f32 %v181, %v377
  %v379 = vpop.f32.mrb[0].mxu0
  %v380 = vpop.f32.mrb[0].mxu0
  %v381 = vadd.f32 %v181, %v380
  %v382 = vpop.f32.mrb[0].mxu0
  %383 = vmatprep.mubr.bf16.mxu0 0
  %384 = vmatmul.mubr.bf16.gmra.mrb[0].mxu0 %v159
  %v385 = vpop.f32.mrb[0].mxu0
  %v386 = vadd.f32 %v181, %v385
  %v387 = vpop.f32.mrb[0].mxu0
  %v388 = vpop.f32.mrb[0].mxu0
  %v389 = vadd.f32 %v181, %v388
  %v390 = vpop.f32.mrb[0].mxu0
  %391 = vdwg.mxu0
  %v392 = vmax.f32 %v266, 0.0
  %v393 = vmax.f32 %v269, 0.0
  %v394 = vmax.f32 %v274, 0.0
  %v395 = vmax.f32 %v277, 0.0
  %v396 = vmax.f32 %v282, 0.0
  %v397 = vmax.f32 %v285, 0.0
  %v398 = vmax.f32 %v290, 0.0
  %v399 = vmax.f32 %v293, 0.0
  %v400 = vmax.f32 %v298, 0.0
  %v401 = vmax.f32 %v301, 0.0
  %v402 = vmax.f32 %v306, 0.0
  %v403 = vmax.f32 %v309, 0.0
  %v404 = vmax.f32 %v314, 0.0
  %v405 = vmax.f32 %v317, 0.0
  %v406 = vmax.f32 %v322, 0.0
  %v407 = vmax.f32 %v325, 0.0
  %v408 = vmax.f32 %v330, 0.0
  %v409 = vmax.f32 %v333, 0.0
  %v410 = vmax.f32 %v338, 0.0
  %v411 = vmax.f32 %v341, 0.0
  %v412 = vmax.f32 %v346, 0.0
  %v413 = vmax.f32 %v349, 0.0
  %v414 = vmax.f32 %v354, 0.0
  %v415 = vmax.f32 %v357, 0.0
  %v416 = vmax.f32 %v362, 0.0
  %v417 = vmax.f32 %v365, 0.0
  %v418 = vmax.f32 %v370, 0.0
  %v419 = vmax.f32 %v373, 0.0
  %v420 = vmax.f32 %v378, 0.0
  %v421 = vmax.f32 %v381, 0.0
  %v422 = vmax.f32 %v386, 0.0
  %v423 = vmax.f32 %v389, 0.0
  %v424 = vpack.c.bf16 %v393, %v392
  %v425 = vpack.c.bf16 %v395, %v394
  %v426 = vpack.c.bf16 %v397, %v396
  %v427 = vpack.c.bf16 %v399, %v398
  %v428 = vpack.c.bf16 %v401, %v400
  %v429 = vpack.c.bf16 %v403, %v402
  %v430 = vpack.c.bf16 %v405, %v404
  %v431 = vpack.c.bf16 %v407, %v406
  %v432 = vpack.c.bf16 %v409, %v408
  %v433 = vpack.c.bf16 %v411, %v410
  %v434 = vpack.c.bf16 %v413, %v412
  %v435 = vpack.c.bf16 %v415, %v414
  %v436 = vpack.c.bf16 %v417, %v416
  %v437 = vpack.c.bf16 %v419, %v418
  %v438 = vpack.c.bf16 %v421, %v420
  %v439 = vpack.c.bf16 %v423, %v422
  %s440 = scalar_lea.vmem %s1, 64
  %v441 = vld [vmem:[%s440] sm:$0xf]
  %v442 = vld [vmem:[%s440 + $0x4] sm:$0xf]
  %v443 = vld [vmem:[%s440 + $0x8] sm:$0xf]
  %v444 = vld [vmem:[%s440 + $0xc] sm:$0xf]
  %v445 = vld [vmem:[%s440 + $0x10] sm:$0xf]
  %v446 = vld [vmem:[%s440 + $0x14] sm:$0xf]
  %v447 = vld [vmem:[%s440 + $0x18] sm:$0xf]
  %v448 = vld [vmem:[%s440 + $0x1c] sm:$0xf]
  %v449 = vld [vmem:[%s440 + $0x20] sm:$0xf]
  %v450 = vld [vmem:[%s440 + $0x24] sm:$0xf]
  %v451 = vld [vmem:[%s440 + $0x28] sm:$0xf]
  %v452 = vld [vmem:[%s440 + $0x2c] sm:$0xf]
  %v453 = vld [vmem:[%s440 + $0x30] sm:$0xf]
  %v454 = vld [vmem:[%s440 + $0x34] sm:$0xf]
  %v455 = vld [vmem:[%s440 + $0x38] sm:$0xf]
  %v456 = vld [vmem:[%s440 + $0x3c] sm:$0xf]
  %s457 = scalar_lea.vmem %s2, 1
  %v458 = vld [vmem:[%s457] sm:$0x1]
  %v460 = vlaneseq
  %v461 = vshrl.u32 %v460, 7
  %v462 = vsub.s32 0, %v461
  %v463 = vrot.slane %v458, %v462
  %v481 = vunpack.c.l.b16 %v441
  %v482 = vunpack.c.l.b16 %v442
  %v483 = vunpack.c.l.b16 %v443
  %v484 = vunpack.c.l.b16 %v444
  %v485 = vunpack.c.l.b16 %v445
  %v486 = vunpack.c.l.b16 %v446
  %v487 = vunpack.c.l.b16 %v447
  %v488 = vunpack.c.l.b16 %v448
  %v489 = vunpack.c.l.b16 %v449
  %v490 = vunpack.c.l.b16 %v450
  %v491 = vunpack.c.l.b16 %v451
  %v492 = vunpack.c.l.b16 %v452
  %v493 = vunpack.c.l.b16 %v453
  %v494 = vunpack.c.l.b16 %v454
  %v495 = vunpack.c.l.b16 %v455
  %v496 = vunpack.c.l.b16 %v456
  %v497 = vpack.c.b16 %v482, %v481
  %v498 = vpack.c.b16 %v484, %v483
  %v499 = vpack.c.b16 %v486, %v485
  %v500 = vpack.c.b16 %v488, %v487
  %v501 = vpack.c.b16 %v490, %v489
  %v502 = vpack.c.b16 %v492, %v491
  %v503 = vpack.c.b16 %v494, %v493
  %v504 = vpack.c.b16 %v496, %v495
  %513 = vmatprep.subr.bf16.mxu0 0
  %514 = vmatpush1.bf16.msra.mxu0 %v497
  %515 = vmatprep.subr.bf16.mxu0 0
  %516 = vmatpush1.bf16.msra.mxu0 %v498
  %517 = vmatprep.subr.bf16.mxu0 0
  %518 = vmatpush1.bf16.msra.mxu0 %v499
  %519 = vmatprep.subr.bf16.mxu0 0
  %520 = vmatpush1.bf16.msra.mxu0 %v500
  %521 = vmatprep.subr.bf16.mxu0 0
  %522 = vmatpush1.bf16.msra.mxu0 %v501
  %523 = vmatprep.subr.bf16.mxu0 0
  %524 = vmatpush1.bf16.msra.mxu0 %v502
  %525 = vmatprep.subr.bf16.mxu0 0
  %526 = vmatpush1.bf16.msra.mxu0 %v503
  %527 = vmatprep.subr.bf16.mxu0 0
  %528 = vmatpush1.bf16.msra.mxu0 %v504
  %529 = vmatprep.subr.bf16.mxu0 0
  %530 = vmatpush1.bf16.msra.mxu0 0
  %531 = vmatprep.subr.bf16.mxu0 0
  %532 = vmatpush1.bf16.msra.mxu0 0
  %533 = vmatprep.subr.bf16.mxu0 0
  %534 = vmatpush1.bf16.msra.mxu0 0
  %535 = vmatprep.subr.bf16.mxu0 0
  %536 = vmatpush1.bf16.msra.mxu0 0
  %537 = vmatprep.subr.bf16.mxu0 0
  %538 = vmatpush1.bf16.msra.mxu0 0
  %539 = vmatprep.subr.bf16.mxu0 0
  %540 = vmatpush1.bf16.msra.mxu0 0
  %541 = vmatprep.subr.bf16.mxu0 0
  %542 = vmatpush1.bf16.msra.mxu0 0
  %543 = vmatprep.subr.bf16.mxu0 0
  %544 = vmatpush1.bf16.msra.mxu0 0
  %545 = vmatprep.mubr.bf16.mxu0 0
  %546 = vmatmul.mubr.bf16.gmra.mrb[0].mxu0 %v424
  %v547 = vpop.f32.mrb[0].mxu0
  %v548 = vadd.f32 %v463, %v547
  %v549 = vpop.f32.mrb[0].mxu0
  %v550 = vpop.f32.mrb[0].mxu0
  %v551 = vadd.f32 %v463, %v550
  %v552 = vpop.f32.mrb[0].mxu0
  %553 = vmatprep.mubr.bf16.mxu0 0
  %554 = vmatmul.mubr.bf16.gmra.mrb[0].mxu0 %v425
  %v555 = vpop.f32.mrb[0].mxu0
  %v556 = vadd.f32 %v463, %v555
  %v557 = vpop.f32.mrb[0].mxu0
  %v558 = vpop.f32.mrb[0].mxu0
  %v559 = vadd.f32 %v463, %v558
  %v560 = vpop.f32.mrb[0].mxu0
  %561 = vmatprep.mubr.bf16.mxu0 0
  %562 = vmatmul.mubr.bf16.gmra.mrb[0].mxu0 %v426
  %v563 = vpop.f32.mrb[0].mxu0
  %v564 = vadd.f32 %v463, %v563
  %v565 = vpop.f32.mrb[0].mxu0
  %v566 = vpop.f32.mrb[0].mxu0
  %v567 = vadd.f32 %v463, %v566
  %v568 = vpop.f32.mrb[0].mxu0
  %569 = vmatprep.mubr.bf16.mxu0 0
  %570 = vmatmul.mubr.bf16.gmra.mrb[0].mxu0 %v427
  %v571 = vpop.f32.mrb[0].mxu0
  %v572 = vadd.f32 %v463, %v571
  %v573 = vpop.f32.mrb[0].mxu0
  %v574 = vpop.f32.mrb[0].mxu0
  %v575 = vadd.f32 %v463, %v574
  %v576 = vpop.f32.mrb[0].mxu0
  %577 = vmatprep.mubr.bf16.mxu0 0
  %578 = vmatmul.mubr.bf16.gmra.mrb[0].mxu0 %v428
  %v579 = vpop.f32.mrb[0].mxu0
  %v580 = vadd.f32 %v463, %v579
  %v581 = vpop.f32.mrb[0].mxu0
  %v582 = vpop.f32.mrb[0].mxu0
  %v583 = vadd.f32 %v463, %v582
  %v584 = vpop.f32.mrb[0].mxu0
  %585 = vmatprep.mubr.bf16.mxu0 0
  %586 = vmatmul.mubr.bf16.gmra.mrb[0].mxu0 %v429
  %v587 = vpop.f32.mrb[0].mxu0
  %v588 = vadd.f32 %v463, %v587
  %v589 = vpop.f32.mrb[0].mxu0
  %v590 = vpop.f32.mrb[0].mxu0
  %v591 = vadd.f32 %v463, %v590
  %v592 = vpop.f32.mrb[0].mxu0
  %593 = vmatprep.mubr.bf16.mxu0 0
  %594 = vmatmul.mubr.bf16.gmra.mrb[0].mxu0 %v430
  %v595 = vpop.f32.mrb[0].mxu0
  %v596 = vadd.f32 %v463, %v595
  %v597 = vpop.f32.mrb[0].mxu0
  %v598 = vpop.f32.mrb[0].mxu0
  %v599 = vadd.f32 %v463, %v598
  %v600 = vpop.f32.mrb[0].mxu0
  %601 = vmatprep.mubr.bf16.mxu0 0
  %602 = vmatmul.mubr.bf16.gmra.mrb[0].mxu0 %v431
  %v603 = vpop.f32.mrb[0].mxu0
  %v604 = vadd.f32 %v463, %v603
  %v605 = vpop.f32.mrb[0].mxu0
  %v606 = vpop.f32.mrb[0].mxu0
  %v607 = vadd.f32 %v463, %v606
  %v608 = vpop.f32.mrb[0].mxu0
  %609 = vmatprep.mubr.bf16.mxu0 0
  %610 = vmatmul.mubr.bf16.gmra.mrb[0].mxu0 %v432
  %v611 = vpop.f32.mrb[0].mxu0
  %v612 = vadd.f32 %v463, %v611
  %v613 = vpop.f32.mrb[0].mxu0
  %v614 = vpop.f32.mrb[0].mxu0
  %v615 = vadd.f32 %v463, %v614
  %v616 = vpop.f32.mrb[0].mxu0
  %617 = vmatprep.mubr.bf16.mxu0 0
  %618 = vmatmul.mubr.bf16.gmra.mrb[0].mxu0 %v433
  %v619 = vpop.f32.mrb[0].mxu0
  %v620 = vadd.f32 %v463, %v619
  %v621 = vpop.f32.mrb[0].mxu0
  %v622 = vpop.f32.mrb[0].mxu0
  %v623 = vadd.f32 %v463, %v622
  %v624 = vpop.f32.mrb[0].mxu0
  %625 = vmatprep.mubr.bf16.mxu0 0
  %626 = vmatmul.mubr.bf16.gmra.mrb[0].mxu0 %v434
  %v627 = vpop.f32.mrb[0].mxu0
  %v628 = vadd.f32 %v463, %v627
  %v629 = vpop.f32.mrb[0].mxu0
  %v630 = vpop.f32.mrb[0].mxu0
  %v631 = vadd.f32 %v463, %v630
  %v632 = vpop.f32.mrb[0].mxu0
  %633 = vmatprep.mubr.bf16.mxu0 0
  %634 = vmatmul.mubr.bf16.gmra.mrb[0].mxu0 %v435
  %v635 = vpop.f32.mrb[0].mxu0
  %v636 = vadd.f32 %v463, %v635
  %v637 = vpop.f32.mrb[0].mxu0
  %v638 = vpop.f32.mrb[0].mxu0
  %v639 = vadd.f32 %v463, %v638
  %v640 = vpop.f32.mrb[0].mxu0
  %641 = vmatprep.mubr.bf16.mxu0 0
  %642 = vmatmul.mubr.bf16.gmra.mrb[0].mxu0 %v436
  %v643 = vpop.f32.mrb[0].mxu0
  %v644 = vadd.f32 %v463, %v643
  %v645 = vpop.f32.mrb[0].mxu0
  %v646 = vpop.f32.mrb[0].mxu0
  %v647 = vadd.f32 %v463, %v646
  %v648 = vpop.f32.mrb[0].mxu0
  %649 = vmatprep.mubr.bf16.mxu0 0
  %650 = vmatmul.mubr.bf16.gmra.mrb[0].mxu0 %v437
  %v651 = vpop.f32.mrb[0].mxu0
  %v652 = vadd.f32 %v463, %v651
  %v653 = vpop.f32.mrb[0].mxu0
  %v654 = vpop.f32.mrb[0].mxu0
  %v655 = vadd.f32 %v463, %v654
  %v656 = vpop.f32.mrb[0].mxu0
  %657 = vmatprep.mubr.bf16.mxu0 0
  %658 = vmatmul.mubr.bf16.gmra.mrb[0].mxu0 %v438
  %v659 = vpop.f32.mrb[0].mxu0
  %v660 = vadd.f32 %v463, %v659
  %v661 = vpop.f32.mrb[0].mxu0
  %v662 = vpop.f32.mrb[0].mxu0
  %v663 = vadd.f32 %v463, %v662
  %v664 = vpop.f32.mrb[0].mxu0
  %665 = vmatprep.mubr.bf16.mxu0 0
  %666 = vmatmul.mubr.bf16.gmra.mrb[0].mxu0 %v439
  %v667 = vpop.f32.mrb[0].mxu0
  %v668 = vadd.f32 %v463, %v667
  %v669 = vpop.f32.mrb[0].mxu0
  %v670 = vpop.f32.mrb[0].mxu0
  %v671 = vadd.f32 %v463, %v670
  %v672 = vpop.f32.mrb[0].mxu0
  %673 = vdwg.mxu0
  %v674 = vmax.f32 %v548, 0.0
  %v675 = vmax.f32 %v551, 0.0
  %v676 = vmax.f32 %v556, 0.0
  %v677 = vmax.f32 %v559, 0.0
  %v678 = vmax.f32 %v564, 0.0
  %v679 = vmax.f32 %v567, 0.0
  %v680 = vmax.f32 %v572, 0.0
  %v681 = vmax.f32 %v575, 0.0
  %v682 = vmax.f32 %v580, 0.0
  %v683 = vmax.f32 %v583, 0.0
  %v684 = vmax.f32 %v588, 0.0
  %v685 = vmax.f32 %v591, 0.0
  %v686 = vmax.f32 %v596, 0.0
  %v687 = vmax.f32 %v599, 0.0
  %v688 = vmax.f32 %v604, 0.0
  %v689 = vmax.f32 %v607, 0.0
  %v690 = vmax.f32 %v612, 0.0
  %v691 = vmax.f32 %v615, 0.0
  %v692 = vmax.f32 %v620, 0.0
  %v693 = vmax.f32 %v623, 0.0
  %v694 = vmax.f32 %v628, 0.0
  %v695 = vmax.f32 %v631, 0.0
  %v696 = vmax.f32 %v636, 0.0
  %v697 = vmax.f32 %v639, 0.0
  %v698 = vmax.f32 %v644, 0.0
  %v699 = vmax.f32 %v647, 0.0
  %v700 = vmax.f32 %v652, 0.0
  %v701 = vmax.f32 %v655, 0.0
  %v702 = vmax.f32 %v660, 0.0
  %v703 = vmax.f32 %v663, 0.0
  %v704 = vmax.f32 %v668, 0.0
  %v705 = vmax.f32 %v671, 0.0
  %v706 = vpack.c.bf16 %v675, %v674
  %v707 = vpack.c.bf16 %v677, %v676
  %v708 = vpack.c.bf16 %v679, %v678
  %v709 = vpack.c.bf16 %v681, %v680
  %v710 = vpack.c.bf16 %v683, %v682
  %v711 = vpack.c.bf16 %v685, %v684
  %v712 = vpack.c.bf16 %v687, %v686
  %v713 = vpack.c.bf16 %v689, %v688
  %v714 = vpack.c.bf16 %v691, %v690
  %v715 = vpack.c.bf16 %v693, %v692
  %v716 = vpack.c.bf16 %v695, %v694
  %v717 = vpack.c.bf16 %v697, %v696
  %v718 = vpack.c.bf16 %v699, %v698
  %v719 = vpack.c.bf16 %v701, %v700
  %v720 = vpack.c.bf16 %v703, %v702
  %v721 = vpack.c.bf16 %v705, %v704
  %s722 = scalar_lea.vmem %s1, 128
  %v723 = vld [vmem:[%s722] sm:$0xf]
  %v724 = vld [vmem:[%s722 + $0x4] sm:$0xf]
  %v725 = vld [vmem:[%s722 + $0x8] sm:$0xf]
  %v726 = vld [vmem:[%s722 + $0xc] sm:$0xf]
  %v727 = vld [vmem:[%s722 + $0x10] sm:$0xf]
  %v728 = vld [vmem:[%s722 + $0x14] sm:$0xf]
  %v729 = vld [vmem:[%s722 + $0x18] sm:$0xf]
  %v730 = vld [vmem:[%s722 + $0x1c] sm:$0xf]
  %v731 = vld [vmem:[%s722 + $0x20] sm:$0xf]
  %v732 = vld [vmem:[%s722 + $0x24] sm:$0xf]
  %v733 = vld [vmem:[%s722 + $0x28] sm:$0xf]
  %v734 = vld [vmem:[%s722 + $0x2c] sm:$0xf]
  %v735 = vld [vmem:[%s722 + $0x30] sm:$0xf]
  %v736 = vld [vmem:[%s722 + $0x34] sm:$0xf]
  %v737 = vld [vmem:[%s722 + $0x38] sm:$0xf]
  %v738 = vld [vmem:[%s722 + $0x3c] sm:$0xf]
  %s739 = scalar_lea.vmem %s2, 2
  %v740 = vld [vmem:[%s739] sm:$0x1]
  %v742 = vlaneseq
  %v743 = vshrl.u32 %v742, 7
  %v744 = vsub.s32 0, %v743
  %v745 = vrot.slane %v740, %v744
  %v763 = vunpack.c.l.b16 %v723
  %v764 = vunpack.c.l.b16 %v724
  %v765 = vunpack.c.l.b16 %v725
  %v766 = vunpack.c.l.b16 %v726
  %v767 = vunpack.c.l.b16 %v727
  %v768 = vunpack.c.l.b16 %v728
  %v769 = vunpack.c.l.b16 %v729
  %v770 = vunpack.c.l.b16 %v730
  %v771 = vunpack.c.l.b16 %v731
  %v772 = vunpack.c.l.b16 %v732
  %v773 = vunpack.c.l.b16 %v733
  %v774 = vunpack.c.l.b16 %v734
  %v775 = vunpack.c.l.b16 %v735
  %v776 = vunpack.c.l.b16 %v736
  %v777 = vunpack.c.l.b16 %v737
  %v778 = vunpack.c.l.b16 %v738
  %v779 = vpack.c.b16 %v764, %v763
  %v780 = vpack.c.b16 %v766, %v765
  %v781 = vpack.c.b16 %v768, %v767
  %v782 = vpack.c.b16 %v770, %v769
  %v783 = vpack.c.b16 %v772, %v771
  %v784 = vpack.c.b16 %v774, %v773
  %v785 = vpack.c.b16 %v776, %v775
  %v786 = vpack.c.b16 %v778, %v777
  %795 = vmatprep.subr.bf16.mxu0 0
  %796 = vmatpush1.bf16.msra.mxu0 %v779
  %797 = vmatprep.subr.bf16.mxu0 0
  %798 = vmatpush1.bf16.msra.mxu0 %v780
  %799 = vmatprep.subr.bf16.mxu0 0
  %800 = vmatpush1.bf16.msra.mxu0 %v781
  %801 = vmatprep.subr.bf16.mxu0 0
  %802 = vmatpush1.bf16.msra.mxu0 %v782
  %803 = vmatprep.subr.bf16.mxu0 0
  %804 = vmatpush1.bf16.msra.mxu0 %v783
  %805 = vmatprep.subr.bf16.mxu0 0
  %806 = vmatpush1.bf16.msra.mxu0 %v784
  %807 = vmatprep.subr.bf16.mxu0 0
  %808 = vmatpush1.bf16.msra.mxu0 %v785
  %809 = vmatprep.subr.bf16.mxu0 0
  %810 = vmatpush1.bf16.msra.mxu0 %v786
  %811 = vmatprep.subr.bf16.mxu0 0
  %812 = vmatpush1.bf16.msra.mxu0 0
  %813 = vmatprep.subr.bf16.mxu0 0
  %814 = vmatpush1.bf16.msra.mxu0 0
  %815 = vmatprep.subr.bf16.mxu0 0
  %816 = vmatpush1.bf16.msra.mxu0 0
  %817 = vmatprep.subr.bf16.mxu0 0
  %818 = vmatpush1.bf16.msra.mxu0 0
  %819 = vmatprep.subr.bf16.mxu0 0
  %820 = vmatpush1.bf16.msra.mxu0 0
  %821 = vmatprep.subr.bf16.mxu0 0
  %822 = vmatpush1.bf16.msra.mxu0 0
  %823 = vmatprep.subr.bf16.mxu0 0
  %824 = vmatpush1.bf16.msra.mxu0 0
  %825 = vmatprep.subr.bf16.mxu0 0
  %826 = vmatpush1.bf16.msra.mxu0 0
  %827 = vmatprep.mubr.bf16.mxu0 0
  %828 = vmatmul.mubr.bf16.gmra.mrb[0].mxu0 %v706
  %v829 = vpop.f32.mrb[0].mxu0
  %v830 = vadd.f32 %v745, %v829
  %v831 = vpop.f32.mrb[0].mxu0
  %v832 = vpop.f32.mrb[0].mxu0
  %v833 = vadd.f32 %v745, %v832
  %v834 = vpop.f32.mrb[0].mxu0
  %835 = vmatprep.mubr.bf16.mxu0 0
  %836 = vmatmul.mubr.bf16.gmra.mrb[0].mxu0 %v707
  %v837 = vpop.f32.mrb[0].mxu0
  %v838 = vadd.f32 %v745, %v837
  %v839 = vpop.f32.mrb[0].mxu0
  %v840 = vpop.f32.mrb[0].mxu0
  %v841 = vadd.f32 %v745, %v840
  %v842 = vpop.f32.mrb[0].mxu0
  %843 = vmatprep.mubr.bf16.mxu0 0
  %844 = vmatmul.mubr.bf16.gmra.mrb[0].mxu0 %v708
  %v845 = vpop.f32.mrb[0].mxu0
  %v846 = vadd.f32 %v745, %v845
  %v847 = vpop.f32.mrb[0].mxu0
  %v848 = vpop.f32.mrb[0].mxu0
  %v849 = vadd.f32 %v745, %v848
  %v850 = vpop.f32.mrb[0].mxu0
  %851 = vmatprep.mubr.bf16.mxu0 0
  %852 = vmatmul.mubr.bf16.gmra.mrb[0].mxu0 %v709
  %v853 = vpop.f32.mrb[0].mxu0
  %v854 = vadd.f32 %v745, %v853
  %v855 = vpop.f32.mrb[0].mxu0
  %v856 = vpop.f32.mrb[0].mxu0
  %v857 = vadd.f32 %v745, %v856
  %v858 = vpop.f32.mrb[0].mxu0
  %859 = vmatprep.mubr.bf16.mxu0 0
  %860 = vmatmul.mubr.bf16.gmra.mrb[0].mxu0 %v710
  %v861 = vpop.f32.mrb[0].mxu0
  %v862 = vadd.f32 %v745, %v861
  %v863 = vpop.f32.mrb[0].mxu0
  %v864 = vpop.f32.mrb[0].mxu0
  %v865 = vadd.f32 %v745, %v864
  %v866 = vpop.f32.mrb[0].mxu0
  %867 = vmatprep.mubr.bf16.mxu0 0
  %868 = vmatmul.mubr.bf16.gmra.mrb[0].mxu0 %v711
  %v869 = vpop.f32.mrb[0].mxu0
  %v870 = vadd.f32 %v745, %v869
  %v871 = vpop.f32.mrb[0].mxu0
  %v872 = vpop.f32.mrb[0].mxu0
  %v873 = vadd.f32 %v745, %v872
  %v874 = vpop.f32.mrb[0].mxu0
  %875 = vmatprep.mubr.bf16.mxu0 0
  %876 = vmatmul.mubr.bf16.gmra.mrb[0].mxu0 %v712
  %v877 = vpop.f32.mrb[0].mxu0
  %v878 = vadd.f32 %v745, %v877
  %v879 = vpop.f32.mrb[0].mxu0
  %v880 = vpop.f32.mrb[0].mxu0
  %v881 = vadd.f32 %v745, %v880
  %v882 = vpop.f32.mrb[0].mxu0
  %883 = vmatprep.mubr.bf16.mxu0 0
  %884 = vmatmul.mubr.bf16.gmra.mrb[0].mxu0 %v713
  %v885 = vpop.f32.mrb[0].mxu0
  %v886 = vadd.f32 %v745, %v885
  %v887 = vpop.f32.mrb[0].mxu0
  %v888 = vpop.f32.mrb[0].mxu0
  %v889 = vadd.f32 %v745, %v888
  %v890 = vpop.f32.mrb[0].mxu0
  %891 = vmatprep.mubr.bf16.mxu0 0
  %892 = vmatmul.mubr.bf16.gmra.mrb[0].mxu0 %v714
  %v893 = vpop.f32.mrb[0].mxu0
  %v894 = vadd.f32 %v745, %v893
  %v895 = vpop.f32.mrb[0].mxu0
  %v896 = vpop.f32.mrb[0].mxu0
  %v897 = vadd.f32 %v745, %v896
  %v898 = vpop.f32.mrb[0].mxu0
  %899 = vmatprep.mubr.bf16.mxu0 0
  %900 = vmatmul.mubr.bf16.gmra.mrb[0].mxu0 %v715
  %v901 = vpop.f32.mrb[0].mxu0
  %v902 = vadd.f32 %v745, %v901
  %v903 = vpop.f32.mrb[0].mxu0
  %v904 = vpop.f32.mrb[0].mxu0
  %v905 = vadd.f32 %v745, %v904
  %v906 = vpop.f32.mrb[0].mxu0
  %907 = vmatprep.mubr.bf16.mxu0 0
  %908 = vmatmul.mubr.bf16.gmra.mrb[0].mxu0 %v716
  %v909 = vpop.f32.mrb[0].mxu0
  %v910 = vadd.f32 %v745, %v909
  %v911 = vpop.f32.mrb[0].mxu0
  %v912 = vpop.f32.mrb[0].mxu0
  %v913 = vadd.f32 %v745, %v912
  %v914 = vpop.f32.mrb[0].mxu0
  %915 = vmatprep.mubr.bf16.mxu0 0
  %916 = vmatmul.mubr.bf16.gmra.mrb[0].mxu0 %v717
  %v917 = vpop.f32.mrb[0].mxu0
  %v918 = vadd.f32 %v745, %v917
  %v919 = vpop.f32.mrb[0].mxu0
  %v920 = vpop.f32.mrb[0].mxu0
  %v921 = vadd.f32 %v745, %v920
  %v922 = vpop.f32.mrb[0].mxu0
  %923 = vmatprep.mubr.bf16.mxu0 0
  %924 = vmatmul.mubr.bf16.gmra.mrb[0].mxu0 %v718
  %v925 = vpop.f32.mrb[0].mxu0
  %v926 = vadd.f32 %v745, %v925
  %v927 = vpop.f32.mrb[0].mxu0
  %v928 = vpop.f32.mrb[0].mxu0
  %v929 = vadd.f32 %v745, %v928
  %v930 = vpop.f32.mrb[0].mxu0
  %931 = vmatprep.mubr.bf16.mxu0 0
  %932 = vmatmul.mubr.bf16.gmra.mrb[0].mxu0 %v719
  %v933 = vpop.f32.mrb[0].mxu0
  %v934 = vadd.f32 %v745, %v933
  %v935 = vpop.f32.mrb[0].mxu0
  %v936 = vpop.f32.mrb[0].mxu0
  %v937 = vadd.f32 %v745, %v936
  %v938 = vpop.f32.mrb[0].mxu0
  %939 = vmatprep.mubr.bf16.mxu0 0
  %940 = vmatmul.mubr.bf16.gmra.mrb[0].mxu0 %v720
  %v941 = vpop.f32.mrb[0].mxu0
  %v942 = vadd.f32 %v745, %v941
  %v943 = vpop.f32.mrb[0].mxu0
  %v944 = vpop.f32.mrb[0].mxu0
  %v945 = vadd.f32 %v745, %v944
  %v946 = vpop.f32.mrb[0].mxu0
  %947 = vmatprep.mubr.bf16.mxu0 0
  %948 = vmatmul.mubr.bf16.gmra.mrb[0].mxu0 %v721
  %v949 = vpop.f32.mrb[0].mxu0
  %v950 = vadd.f32 %v745, %v949
  %v951 = vpop.f32.mrb[0].mxu0
  %v952 = vpop.f32.mrb[0].mxu0
  %v953 = vadd.f32 %v745, %v952
  %v954 = vpop.f32.mrb[0].mxu0
  %955 = vdwg.mxu0
  %956 = vst [vmem:[%s3] sm:$0xff] %v830
  %957 = vst [vmem:[%s3 + $0x8] sm:$0xff] %v833
  %958 = vst [vmem:[%s3 + $0x10] sm:$0xff] %v838
  %959 = vst [vmem:[%s3 + $0x18] sm:$0xff] %v841
  %960 = vst [vmem:[%s3 + $0x20] sm:$0xff] %v846
  %961 = vst [vmem:[%s3 + $0x28] sm:$0xff] %v849
  %962 = vst [vmem:[%s3 + $0x30] sm:$0xff] %v854
  %963 = vst [vmem:[%s3 + $0x38] sm:$0xff] %v857
  %964 = vst [vmem:[%s3 + $0x40] sm:$0xff] %v862
  %965 = vst [vmem:[%s3 + $0x48] sm:$0xff] %v865
  %966 = vst [vmem:[%s3 + $0x50] sm:$0xff] %v870
  %967 = vst [vmem:[%s3 + $0x58] sm:$0xff] %v873
  %968 = vst [vmem:[%s3 + $0x60] sm:$0xff] %v878
  %969 = vst [vmem:[%s3 + $0x68] sm:$0xff] %v881
  %970 = vst [vmem:[%s3 + $0x70] sm:$0xff] %v886
  %971 = vst [vmem:[%s3 + $0x78] sm:$0xff] %v889
  %972 = vst [vmem:[%s3 + $0x80] sm:$0xff] %v894
  %973 = vst [vmem:[%s3 + $0x88] sm:$0xff] %v897
  %974 = vst [vmem:[%s3 + $0x90] sm:$0xff] %v902
  %975 = vst [vmem:[%s3 + $0x98] sm:$0xff] %v905
  %976 = vst [vmem:[%s3 + $0xa0] sm:$0xff] %v910
  %977 = vst [vmem:[%s3 + $0xa8] sm:$0xff] %v913
  %978 = vst [vmem:[%s3 + $0xb0] sm:$0xff] %v918
  %979 = vst [vmem:[%s3 + $0xb8] sm:$0xff] %v921
  %980 = vst [vmem:[%s3 + $0xc0] sm:$0xff] %v926
  %981 = vst [vmem:[%s3 + $0xc8] sm:$0xff] %v929
  %982 = vst [vmem:[%s3 + $0xd0] sm:$0xff] %v934
  %983 = vst [vmem:[%s3 + $0xd8] sm:$0xff] %v937
  %984 = vst [vmem:[%s3 + $0xe0] sm:$0xff] %v942
  %985 = vst [vmem:[%s3 + $0xe8] sm:$0xff] %v945
  %986 = vst [vmem:[%s3 + $0xf0] sm:$0xff] %v950
  %987 = vst [vmem:[%s3 + $0xf8] sm:$0xff] %v953
  // Predicated region
  $region14: #{qnetwork_forward.1} parent=0 // pred_check
    _
  $region15: #{qnetwork_forward.1} parent=0 // pred_check_branch
    %989 = sbr.rel (0) target = $region17
  $region16: #{qnetwork_forward.1} parent=0 // pred_region
    _
  $region17: #{qnetwork_forward.1} parent=0 // pred_fallthru
    _
  // Predicated region
  $region18: #{qnetwork_forward.1} parent=0 // pred_check
    _
  $region19: #{qnetwork_forward.1} parent=0 // pred_check_branch
    %991 = sbr.rel (0) target = $region21
  $region20: #{qnetwork_forward.1} parent=0 // pred_region
    _
  $region21: #{qnetwork_forward.1} parent=0 // pred_fallthru
    _

</llo_original>
